<compile_context>
chip_gen: v6e
topology: v6e:2x2x1
jax: 0.10.0
libtpu: 0.0.40
codegen_flags: <defaults>
</compile_context>

<pallas_src>
import jax
import jax.numpy as jnp
from jax.experimental import pallas as pl
from jax.experimental.pallas import tpu as pltpu


CHUNK = 128  # hidden-dim chunk width for the fused layer-2/3 loop (one lane tile)


def _round_up(x, m):
    return (x + m - 1) // m * m


def qnet_kernel(s_ref, a_ref, w1s_ref, w1a_ref, b1_ref, w2_ref, b2_ref,
                w3_ref, b3_ref, o_ref):
    # ---- Layer 1 (concat-free): state @ W1_s + action @ W1_a + b1 -----------
    s = s_ref[...].astype(jnp.bfloat16)                   # bf16 MXU inputs,
    a = a_ref[...].astype(jnp.bfloat16)                   # f32 accumulation.
    h1 = (jnp.dot(s, w1s_ref[...], preferred_element_type=jnp.float32)
          + jnp.dot(a, w1a_ref[...], preferred_element_type=jnp.float32)
          + b1_ref[...])
    h1 = jnp.maximum(h1, 0.0).astype(jnp.bfloat16)        # (tile, H) bf16

    # ---- Fused layers 2+3 over 128-wide hidden chunks ------------------------
    # Never materialize the full (tile, H) f32 h2 (at tile>=256, H=256 it filled
    # the whole vreg file and spilled): each chunk is consumed immediately by
    # bias + ReLU + w3 scaling and folded into one (tile, CHUNK) running partial.
    hidden = w2_ref.shape[1]
    n_chunks = hidden // CHUNK      # hidden is padded to a multiple of 128
    q_part = None
    for c in range(n_chunks):       # static trip count -> static, lane-aligned slices
        sl = slice(c * CHUNK, (c + 1) * CHUNK)
        h2_c = jnp.dot(h1, w2_ref[:, sl], preferred_element_type=jnp.float32)
        h2_c = jnp.maximum(h2_c + b2_ref[:, sl], 0.0)      # f32 (v5e VPU has no bf16)
        contrib = h2_c * w3_ref[:, sl]                     # fold layer 3 (VPU)
        q_part = contrib if q_part is None else q_part + contrib

    # ---- Layer 3 tail: one lane reduction (XLU) + bias ------------------------
    q = jnp.sum(q_part, axis=-1, keepdims=True) + b3_ref[...]
    o_ref[...] = q.astype(o_ref.dtype)                     # (tile, 1)


def qnetwork_forward(state, action, params, *, tile_b=512):
    """state: (B, state_dim) f32, action: (B, action_dim) f32 -> (B, 1) f32."""
    w1s, w1a, b1, w2, b2, w3row, b3 = params
    B, state_dim = state.shape
    action_dim = action.shape[1]
    hidden = w2.shape[1]
    assert hidden % CHUNK == 0, "init_params pads hidden to a multiple of 128"

    # Batch tile: large enough to amortize per-grid-step overhead, never larger
    # than the (sublane-rounded) batch.  If that leaves a single grid step,
    # halve it so both v7x TensorCores get work ("parallel" batch axis).
    tile = max(8, min(tile_b, _round_up(B, 8)))
    if pl.cdiv(B, tile) < 2 and B > 8:
        tile = max(8, _round_up(pl.cdiv(B, 2), 8))
    grid = (pl.cdiv(B, tile),)     # ragged last block: pad rows are never written back

    batch_map = lambda i: (i, 0)
    resident = lambda i: (0, 0)    # same block every step -> stays in VMEM

    flops = 2 * B * hidden * (state_dim + action_dim + hidden + 1)
    bytes_accessed = (
        B * (state_dim + action_dim + 1) * 4                           # x in, q out
        + (w1s.size + w1a.size + w2.size) * 2                          # bf16 weights
        + (b1.size + b2.size + w3row.size + b3.size) * 4)              # f32 rest

    # VMEM footprint: double-buffered activation tiles + resident weights +
    # in-kernel intermediates.  Only raise the scoped limit when the default
    # (~32 MiB) is insufficient; cap far below v5e/v6e physical (128 MiB).
    vmem_need = int(
        2 * tile * (state_dim + action_dim) * 4            # input tiles (x2 buffers)
        + 2 * tile * 128 * 4                               # (tile, 1) out blocks, lane-padded
        + 2 * ((w1s.size + w1a.size + w2.size) * 2
               + (b1.size + b2.size + w3row.size + b3.size) * 4)
        + tile * hidden * 8                                # h1 + one f32 chunk in flight
        + (4 << 20))                                       # headroom
    vmem_limit = min(vmem_need, 96 << 20) if vmem_need > (32 << 20) else None

    return pl.pallas_call(
        qnet_kernel,
        out_shape=jax.ShapeDtypeStruct((B, 1), jnp.float32),
        grid=grid,
        in_specs=[
            pl.BlockSpec((tile, state_dim), batch_map),    # state tile
            pl.BlockSpec((tile, action_dim), batch_map),   # action tile
            pl.BlockSpec((state_dim, hidden), resident),   # W1[:state_dim]  (bf16)
            pl.BlockSpec((action_dim, hidden), resident),  # W1[state_dim:]  (bf16)
            pl.BlockSpec((1, hidden), resident),           # b1
            pl.BlockSpec((hidden, hidden), resident),      # W2              (bf16)
            pl.BlockSpec((1, hidden), resident),           # b2
            pl.BlockSpec((1, hidden), resident),           # W3 as a row vector
            pl.BlockSpec((1, 1), resident),                # b3
        ],
        out_specs=pl.BlockSpec((tile, 1), batch_map),
        compiler_params=pltpu.CompilerParams(
            dimension_semantics=("parallel",),             # megacore / 2-TC split
            vmem_limit_bytes=vmem_limit),
        cost_estimate=pl.CostEstimate(
            flops=flops, transcendentals=0, bytes_accessed=bytes_accessed),
    )(state, action, w1s, w1a, b1, w2, b2, w3row, b3)


def init_params(key, state_dim, action_dim, hidden_dim=256):
    """Kernel-ready synthetic params (nn.Linear-style U(-1/sqrt(fan_in)) init).

    W1 is pre-split into state/action halves, MXU weights are bf16, biases and
    the (1, H) last-layer row are f32.  hidden is zero-padded to a multiple of
    128: padded units have zero in-weights, bias and out-weights, so
    ReLU(0) = 0 contributes nothing and the padded network is exact."""
    in_dim = state_dim + action_dim
    k1, k2, k3 = jax.random.split(key, 3)

    def linear(k, fan_in, fan_out):
        bound = 1.0 / (fan_in ** 0.5)
        kw, kb = jax.random.split(k)
        w = jax.random.uniform(kw, (fan_in, fan_out), jnp.float32, -bound, bound)
        b = jax.random.uniform(kb, (1, fan_out), jnp.float32, -bound, bound)
        return w, b

    w1, b1 = linear(k1, in_dim, hidden_dim)
    w2, b2 = linear(k2, hidden_dim, hidden_dim)
    w3, b3 = linear(k3, hidden_dim, 1)

    hp = _round_up(max(hidden_dim, CHUNK), CHUNK)
    if hp != hidden_dim:
        pad = hp - hidden_dim
        w1 = jnp.pad(w1, ((0, 0), (0, pad)))
        b1 = jnp.pad(b1, ((0, 0), (0, pad)))
        w2 = jnp.pad(w2, ((0, pad), (0, pad)))
        b2 = jnp.pad(b2, ((0, 0), (0, pad)))
        w3 = jnp.pad(w3, ((0, pad), (0, 0)))

    w1s = w1[:state_dim].astype(jnp.bfloat16)
    w1a = w1[state_dim:].astype(jnp.bfloat16)
    w2b = w2.astype(jnp.bfloat16)
    w3row = w3.reshape(1, hp)                              # f32, used on the VPU
    return (w1s, w1a, b1, w2b, b2, w3row, b3)


def _reference_forward(state, action, params):
    """Pure-JAX reference of the same math (bf16 MXU inputs, f32 accumulate)."""
    w1s, w1a, b1, w2, b2, w3row, b3 = params
    sb = state.astype(jnp.bfloat16)
    ab = action.astype(jnp.bfloat16)
    h1 = (jnp.dot(sb, w1s, preferred_element_type=jnp.float32)
          + jnp.dot(ab, w1a, preferred_element_type=jnp.float32) + b1)
    h1 = jnp.maximum(h1, 0.0).astype(jnp.bfloat16)
    h2 = jnp.dot(h1, w2, preferred_element_type=jnp.float32) + b2
    h2 = jnp.maximum(h2, 0.0)
    return jnp.sum(h2 * w3row, axis=-1, keepdims=True) + b3


if __name__ == "__main__":
    state_dim, action_dim, hidden_dim = 12, 4, 32
    batch = 8

    key = jax.random.PRNGKey(0)
    kp, ks, ka = jax.random.split(key, 3)

    params = init_params(kp, state_dim, action_dim, hidden_dim)
    state = jax.random.normal(ks, (batch, state_dim), jnp.float32)
    action = jax.random.normal(ka, (batch, action_dim), jnp.float32)

    fwd = jax.jit(qnetwork_forward)
    out = jax.block_until_ready(fwd(state, action, params))

    ref = _reference_forward(state, action, params)
    assert out.shape == (batch, 1)
    # bf16 MXU inputs -> compare against a bf16-quantized reference; tolerance
    # covers accumulation-order differences between chunked and full matmuls.
    assert jnp.allclose(out, ref, atol=1e-3, rtol=1e-3), (out, ref)

    print("KERNEL_OK")
</pallas_src>

<mosaic_0001>
module attributes {stable_mosaic.version = 11 : i64} {
  func.func @qnet_kernel(%arg0: i32, %arg1: memref<8x12xf32, #tpu.memory_space<vmem>>, %arg2: memref<8x4xf32, #tpu.memory_space<vmem>>, %arg3: memref<12x128xbf16, #tpu.memory_space<vmem>>, %arg4: memref<4x128xbf16, #tpu.memory_space<vmem>>, %arg5: memref<1x128xf32, #tpu.memory_space<vmem>>, %arg6: memref<128x128xbf16, #tpu.memory_space<vmem>>, %arg7: memref<1x128xf32, #tpu.memory_space<vmem>>, %arg8: memref<1x128xf32, #tpu.memory_space<vmem>>, %arg9: memref<1x1xf32, #tpu.memory_space<vmem>>, %arg10: memref<8x1xf32, #tpu.memory_space<vmem>>) attributes {dimension_semantics = [#tpu.dimension_semantics<parallel>], iteration_bounds = array<i64: 1>, scalar_prefetch = 0 : i64, scratch_operands = 0 : i64, tpu.core_type = #tpu.core_type<tc>, window_params = [{transform_indices = @transform_0, window_bounds = array<i64: 8, 12>}, {transform_indices = @transform_1, window_bounds = array<i64: 8, 4>}, {pipeline_mode = #tpu.pipeline_mode<synchronous>, transform_indices = @transform_2, window_bounds = array<i64: 12, 128>}, {pipeline_mode = #tpu.pipeline_mode<synchronous>, transform_indices = @transform_3, window_bounds = array<i64: 4, 128>}, {pipeline_mode = #tpu.pipeline_mode<synchronous>, transform_indices = @transform_4, window_bounds = array<i64: 1, 128>}, {pipeline_mode = #tpu.pipeline_mode<synchronous>, transform_indices = @transform_5, window_bounds = array<i64: 128, 128>}, {pipeline_mode = #tpu.pipeline_mode<synchronous>, transform_indices = @transform_6, window_bounds = array<i64: 1, 128>}, {pipeline_mode = #tpu.pipeline_mode<synchronous>, transform_indices = @transform_7, window_bounds = array<i64: 1, 128>}, {pipeline_mode = #tpu.pipeline_mode<synchronous>, transform_indices = @transform_8, window_bounds = array<i64: 1, 1>}, {transform_indices = @transform_9, window_bounds = array<i64: 8, 1>}]} {
    %c0 = arith.constant 0 : index
    %c0_0 = arith.constant 0 : index
    %0 = vector.load %arg1[%c0, %c0_0] : memref<8x12xf32, #tpu.memory_space<vmem>>, vector<8x12xf32>
    %1 = arith.truncf %0 : vector<8x12xf32> to vector<8x12xbf16>
    %c0_1 = arith.constant 0 : index
    %c0_2 = arith.constant 0 : index
    %2 = vector.load %arg2[%c0_1, %c0_2] : memref<8x4xf32, #tpu.memory_space<vmem>>, vector<8x4xf32>
    %3 = arith.truncf %2 : vector<8x4xf32> to vector<8x4xbf16>
    %c0_3 = arith.constant 0 : index
    %c0_4 = arith.constant 0 : index
    %4 = vector.load %arg3[%c0_3, %c0_4] : memref<12x128xbf16, #tpu.memory_space<vmem>>, vector<12x128xbf16>
    %cst = arith.constant dense<0.000000e+00> : vector<8x128xf32>
    %5 = tpu.matmul %1, %4, %cst {dimension_numbers = #tpu.dot_dimension_numbers<[1], [0], [0], [1], [0, 0, 1, 1], [], []>} : vector<8x12xbf16>, vector<12x128xbf16>, vector<8x128xf32> -> vector<8x128xf32>
    %c0_5 = arith.constant 0 : index
    %c0_6 = arith.constant 0 : index
    %6 = vector.load %arg4[%c0_5, %c0_6] : memref<4x128xbf16, #tpu.memory_space<vmem>>, vector<4x128xbf16>
    %cst_7 = arith.constant dense<0.000000e+00> : vector<8x128xf32>
    %7 = tpu.matmul %3, %6, %cst_7 {dimension_numbers = #tpu.dot_dimension_numbers<[1], [0], [0], [1], [0, 0, 1, 1], [], []>} : vector<8x4xbf16>, vector<4x128xbf16>, vector<8x128xf32> -> vector<8x128xf32>
    %8 = arith.addf %5, %7 : vector<8x128xf32>
    %c0_8 = arith.constant 0 : index
    %c0_9 = arith.constant 0 : index
    %9 = vector.load %arg5[%c0_8, %c0_9] : memref<1x128xf32, #tpu.memory_space<vmem>>, vector<1x128xf32>
    %10 = vector.broadcast %9 : vector<1x128xf32> to vector<8x128xf32>
    %11 = arith.addf %8, %10 : vector<8x128xf32>
    %cst_10 = arith.constant 0.000000e+00 : f32
    %12 = vector.broadcast %cst_10 : f32 to vector<8x128xf32>
    %13 = arith.maximumf %11, %12 : vector<8x128xf32>
    %14 = arith.truncf %13 : vector<8x128xf32> to vector<8x128xbf16>
    %c0_11 = arith.constant 0 : index
    %c0_12 = arith.constant 0 : index
    %15 = vector.load %arg6[%c0_11, %c0_12] : memref<128x128xbf16, #tpu.memory_space<vmem>>, vector<128x128xbf16>
    %cst_13 = arith.constant dense<0.000000e+00> : vector<8x128xf32>
    %16 = tpu.matmul %14, %15, %cst_13 {dimension_numbers = #tpu.dot_dimension_numbers<[1], [0], [0], [1], [0, 0, 1, 1], [], []>} : vector<8x128xbf16>, vector<128x128xbf16>, vector<8x128xf32> -> vector<8x128xf32>
    %c0_14 = arith.constant 0 : index
    %c0_15 = arith.constant 0 : index
    %17 = vector.load %arg7[%c0_14, %c0_15] : memref<1x128xf32, #tpu.memory_space<vmem>>, vector<1x128xf32>
    %18 = vector.broadcast %17 : vector<1x128xf32> to vector<8x128xf32>
    %19 = arith.addf %16, %18 : vector<8x128xf32>
    %cst_16 = arith.constant 0.000000e+00 : f32
    %20 = vector.broadcast %cst_16 : f32 to vector<8x128xf32>
    %21 = arith.maximumf %19, %20 : vector<8x128xf32>
    %c0_17 = arith.constant 0 : index
    %c0_18 = arith.constant 0 : index
    %22 = vector.load %arg8[%c0_17, %c0_18] : memref<1x128xf32, #tpu.memory_space<vmem>>, vector<1x128xf32>
    %23 = vector.broadcast %22 : vector<1x128xf32> to vector<8x128xf32>
    %24 = arith.mulf %21, %23 : vector<8x128xf32>
    %cst_19 = arith.constant dense<0.000000e+00> : vector<8xf32>
    %25 = vector.multi_reduction <add>, %24, %cst_19 [1] : vector<8x128xf32> to vector<8xf32>
    %26 = vector.shape_cast %25 : vector<8xf32> to vector<8x1xf32>
    %c0_20 = arith.constant 0 : index
    %c0_21 = arith.constant 0 : index
    %27 = vector.load %arg9[%c0_20, %c0_21] : memref<1x1xf32, #tpu.memory_space<vmem>>, vector<1x1xf32>
    %28 = vector.broadcast %27 : vector<1x1xf32> to vector<8x1xf32>
    %29 = arith.addf %26, %28 : vector<8x1xf32>
    %c0_22 = arith.constant 0 : index
    %c0_23 = arith.constant 0 : index
    %30 = vector.load %arg10[%c0_22, %c0_23] : memref<8x1xf32, #tpu.memory_space<vmem>>, vector<8x1xf32>
    tpu.vector_store %arg10[%c0_22, %c0_23], %29 {strides = array<i32>} : memref<8x1xf32, #tpu.memory_space<vmem>>, vector<8x1xf32>,
    return
  }
  func.func @transform_0(%arg0: i32) -> (i32, i32) {
    %c0_i32 = arith.constant 0 : i32
    %c0_i32_0 = arith.constant 0 : i32
    return %arg0, %c0_i32 : i32, i32
  }
  func.func @transform_1(%arg0: i32) -> (i32, i32) {
    %c0_i32 = arith.constant 0 : i32
    %c0_i32_0 = arith.constant 0 : i32
    return %arg0, %c0_i32 : i32, i32
  }
  func.func @transform_2(%arg0: i32) -> (i32, i32) {
    %c0_i32 = arith.constant 0 : i32
    %c0_i32_0 = arith.constant 0 : i32
    %c0_i32_1 = arith.constant 0 : i32
    return %c0_i32, %c0_i32_0 : i32, i32
  }
  func.func @transform_3(%arg0: i32) -> (i32, i32) {
    %c0_i32 = arith.constant 0 : i32
    %c0_i32_0 = arith.constant 0 : i32
    %c0_i32_1 = arith.constant 0 : i32
    return %c0_i32, %c0_i32_0 : i32, i32
  }
  func.func @transform_4(%arg0: i32) -> (i32, i32) {
    %c0_i32 = arith.constant 0 : i32
    %c0_i32_0 = arith.constant 0 : i32
    %c0_i32_1 = arith.constant 0 : i32
    return %c0_i32, %c0_i32_0 : i32, i32
  }
  func.func @transform_5(%arg0: i32) -> (i32, i32) {
    %c0_i32 = arith.constant 0 : i32
    %c0_i32_0 = arith.constant 0 : i32
    %c0_i32_1 = arith.constant 0 : i32
    return %c0_i32, %c0_i32_0 : i32, i32
  }
  func.func @transform_6(%arg0: i32) -> (i32, i32) {
    %c0_i32 = arith.constant 0 : i32
    %c0_i32_0 = arith.constant 0 : i32
    %c0_i32_1 = arith.constant 0 : i32
    return %c0_i32, %c0_i32_0 : i32, i32
  }
  func.func @transform_7(%arg0: i32) -> (i32, i32) {
    %c0_i32 = arith.constant 0 : i32
    %c0_i32_0 = arith.constant 0 : i32
    %c0_i32_1 = arith.constant 0 : i32
    return %c0_i32, %c0_i32_0 : i32, i32
  }
  func.func @transform_8(%arg0: i32) -> (i32, i32) {
    %c0_i32 = arith.constant 0 : i32
    %c0_i32_0 = arith.constant 0 : i32
    %c0_i32_1 = arith.constant 0 : i32
    return %c0_i32, %c0_i32_0 : i32, i32
  }
  func.func @transform_9(%arg0: i32) -> (i32, i32) {
    %c0_i32 = arith.constant 0 : i32
    %c0_i32_0 = arith.constant 0 : i32
    return %arg0, %c0_i32 : i32, i32
  }
}

</mosaic_0001>

<llo_original>
// kernel: qnetwork_forward.1
$region0: #{qnetwork_forward.1}
  #allocation0 [shape = 'u32[]', space=smem, size = 0x4, offset = 0x4, fixed_abs, tag = 'smem constant byte address 0x4 - core index']
  #allocation1 [shape = 'u32[144,128]{1,0:T(1,128)}', space=vmem, size = 0x12000, scoped, tag = 'internal scratch']
  #allocation2 [shape = 'f32[1,1]{1,0:T(1,128)S(1)}', space=vmem, size = 0x200, scoped, tag = 'scoped memory for qnetwork_forward.1']
  %s0 = inlined_call_operand.vmem [shape: f32[8,12], index: 0, kind: input, shape index: {}]
  %s1 = inlined_call_operand.vmem [shape: f32[8,4], index: 1, kind: input, shape index: {}]
  %s2 = inlined_call_operand.vmem [shape: bf16[12,128], index: 2, kind: input, shape index: {}]
  %s3 = inlined_call_operand.vmem [shape: bf16[4,128], index: 3, kind: input, shape index: {}]
  %s4 = inlined_call_operand.vmem [shape: f32[1,128], index: 4, kind: input, shape index: {}]
  %s5 = inlined_call_operand.hbm [shape: bf16[128,128], index: 5, kind: input, shape index: {}]
  %s6 = inlined_call_operand.vmem [shape: f32[1,128], index: 6, kind: input, shape index: {}]
  %s7 = inlined_call_operand.vmem [shape: f32[1,128], index: 7, kind: input, shape index: {}]
  %s8 = inlined_call_operand.<no memory space> [shape: f32[1,1], index: 8, kind: input, shape index: {}]
  %s9 = inlined_call_operand.vmem [shape: f32[8,1], index: 9, kind: output, shape index: {}]
  %s10 = sld [smem:[#allocation0]]
  $region50: #{qnetwork_forward.1} parent=0
    _
  %s12 = ssub.s32 1, %s10
  %s13 = scalar_select 0, %s12, %s10
  %v14 = vstv %s8
  %15 = vst [vmem:[#allocation2] sm:$0x1] %v14
  $region1: #{qnetwork_forward.1} parent=0
    #allocation3 [shape = 'u8[32768]{0}', space=vmem, size = 0x8000, scoped, tag = 'input window, operand 5, single buffered']
    #allocation4 [shape = 's32[1]{0}', space=sflag, size = 0x4, scoped, tag = 'scoped memory for qnetwork_forward.1']
    %16 = vsyncpa [#allocation4], 0
    // Predicated region
    $region2: #{qnetwork_forward.1} parent=1 // pred_check
      _
    $region3: #{qnetwork_forward.1} parent=1 // pred_check_branch
      %18 = sbr.rel (0) target = $region5
    $region4: #{qnetwork_forward.1} parent=1 // pred_region
      _
    $region5: #{qnetwork_forward.1} parent=1 // pred_fallthru
      _
    // Predicated region
    $region6: #{qnetwork_forward.1} parent=1 // pred_check
      _
    $region7: #{qnetwork_forward.1} parent=1 // pred_check_branch
      %20 = sbr.rel (0) target = $region9
    $region8: #{qnetwork_forward.1} parent=1 // pred_region
      _
    $region9: #{qnetwork_forward.1} parent=1 // pred_fallthru
      _
    // Predicated region
    $region10: #{qnetwork_forward.1} parent=1 // pred_check
      _
    $region11: #{qnetwork_forward.1} parent=1 // pred_check_branch
      %22 = sbr.rel (0) target = $region13
    $region12: #{qnetwork_forward.1} parent=1 // pred_region
      _
    $region13: #{qnetwork_forward.1} parent=1 // pred_fallthru
      _
    // Predicated region
    $region14: #{qnetwork_forward.1} parent=1 // pred_check
      _
    $region15: #{qnetwork_forward.1} parent=1 // pred_check_branch
      %24 = sbr.rel (0) target = $region17
    $region16: #{qnetwork_forward.1} parent=1 // pred_region
      _
    $region17: #{qnetwork_forward.1} parent=1 // pred_fallthru
      _
    // Predicated region
    $region18: #{qnetwork_forward.1} parent=1 // pred_check
      _
    $region19: #{qnetwork_forward.1} parent=1 // pred_check_branch
      %26 = sbr.rel (0) target = $region21
    $region20: #{qnetwork_forward.1} parent=1 // pred_region
      _
    $region21: #{qnetwork_forward.1} parent=1 // pred_fallthru
      _
    // Predicated region
    $region22: #{qnetwork_forward.1} parent=1 // pred_check
      _
    $region23: #{qnetwork_forward.1} parent=1 // pred_check_branch
      %28 = sbr.rel (0) target = $region25
    $region24: #{qnetwork_forward.1} parent=1 // pred_region
      %s30 = ssub.s32 1024, 1024
      %31 = vsyncadd [#allocation4], %s30
      %s32 = sshll.u32 [#allocation3], 4
      %s33 = int_to_ptr.vmem [resolvable:$true] %s32
      %38 = dma.hbm_to_vmem [thread:$0]  %s5, 1024, %s33, [#allocation4], 64, 64, 4
    $region25: #{qnetwork_forward.1} parent=1 // pred_fallthru
      _
    // Predicated region
    $region26: #{qnetwork_forward.1} parent=1 // pred_check
      _
    $region27: #{qnetwork_forward.1} parent=1 // pred_check_branch
      %40 = sbr.rel (0) target = $region29
    $region28: #{qnetwork_forward.1} parent=1 // pred_region
      _
    $region29: #{qnetwork_forward.1} parent=1 // pred_fallthru
      _
    // Predicated region
    $region30: #{qnetwork_forward.1} parent=1 // pred_check
      _
    $region31: #{qnetwork_forward.1} parent=1 // pred_check_branch
      %42 = sbr.rel (0) target = $region33
    $region32: #{qnetwork_forward.1} parent=1 // pred_region
      _
    $region33: #{qnetwork_forward.1} parent=1 // pred_fallthru
      _
    // Predicated region
    $region34: #{qnetwork_forward.1} parent=1 // pred_check
      _
    $region35: #{qnetwork_forward.1} parent=1 // pred_check_branch
      %44 = sbr.rel (0) target = $region37
    $region36: #{qnetwork_forward.1} parent=1 // pred_region
      _
    $region37: #{qnetwork_forward.1} parent=1 // pred_fallthru
      _
    // Predicated region
    $region38: #{qnetwork_forward.1} parent=1 // pred_check
      _
    $region39: #{qnetwork_forward.1} parent=1 // pred_check_branch
      %46 = sbr.rel (0) target = $region41
    $region40: #{qnetwork_forward.1} parent=1 // pred_region
      %47 = dma.done [#allocation4], 1024
    $region41: #{qnetwork_forward.1} parent=1 // pred_fallthru
      _
    %v49 = vld [vmem:[%s0] sm:$0xff]
    %v50 = vpack.c.bf16 %v49, %v49
    %v51 = vld [vmem:[%s1] sm:$0xff]
    %v52 = vpack.c.bf16 %v51, %v51
    %v53 = vld [vmem:[%s2] sm:$0xf]
    %v54 = vld [vmem:[%s2 + $0x4] sm:$0x3]
    %v55 = vld [vmem:[%s3] sm:$0x3]
    %vm56 = vcmask 31744
    %v58 = vsel %vm56, %v52, 0
    %vm60 = vcmask 1041408
    %v62 = vsel %vm60, %v55, 0
    %64 = vmatprep.subr.bf16.mxu0 0
    %65 = vmatpush1.bf16.msra.mxu0 0
    %66 = vmatprep.subr.bf16.mxu0 0
    %67 = vmatpush1.bf16.msra.mxu0 0
    %68 = vmatprep.subr.bf16.mxu0 0
    %69 = vmatpush1.bf16.msra.mxu0 0
    %70 = vmatprep.subr.bf16.mxu0 0
    %71 = vmatpush1.bf16.msra.mxu0 0
    %72 = vmatprep.subr.bf16.mxu0 0
    %73 = vmatpush1.bf16.msra.mxu0 0
    %74 = vmatprep.subr.bf16.mxu0 0
    %75 = vmatpush1.bf16.msra.mxu0 0
    %76 = vmatprep.subr.bf16.mxu0 0
    %77 = vmatpush1.bf16.msra.mxu0 0
    %78 = vmatprep.subr.bf16.mxu0 0
    %79 = vmatpush1.bf16.msra.mxu0 %v62
    %80 = vmatprep.subr.bf16.mxu0 0
    %81 = vmatpush2.bf16.msra.mxu0 0
    %82 = vmatprep.subr.bf16.mxu0 0
    %83 = vmatpush2.bf16.msra.mxu0 0
    %84 = vmatprep.subr.bf16.mxu0 0
    %85 = vmatpush2.bf16.msra.mxu0 0
    %86 = vmatprep.subr.bf16.mxu0 0
    %87 = vmatpush2.bf16.msra.mxu0 0
    %88 = vmatprep.subr.bf16.mxu0 0
    %89 = vmatpush2.bf16.msra.mxu0 0
    %90 = vmatprep.subr.bf16.mxu0 0
    %91 = vmatpush2.bf16.msra.mxu0 0
    %92 = vmatprep.subr.bf16.mxu0 0
    %93 = vmatpush2.bf16.msra.mxu0 0
    %94 = vmatprep.subr.bf16.mxu0 0
    %95 = vmatpush2.bf16.msra.mxu0 0
    %96 = vmatprep.mubr.bf16.mxu0 0
    %97 = vmatmul.mubr.bf16.gmra.mxu0 %v58
    %v98 = vpop.f32.mrf.mxu0
    %v99 = vadd.f32 0.0, %v98
    %v100 = vpop.f32.mrf.mxu0
    %v101 = vpop.f32.mrf.mxu0
    %v102 = vpop.f32.mrf.mxu0
    %103 = vdwg.mxu0
    %v106 = vunpack.c.l.b16 %v53
    %v107 = vunpack.c.l.b16 %v54
    %v108 = vpack.c.b16 %v107, %v106
    %vm109 = vcmask 97280
    %v111 = vsel %vm109, %v50, 0
    %vm113 = vcmask 1045504
    %v115 = vsel %vm113, %v108, 0
    %117 = vmatprep.subr.bf16.mxu0 0
    %118 = vmatpush1.bf16.msra.mxu0 0
    %119 = vmatprep.subr.bf16.mxu0 0
    %120 = vmatpush1.bf16.msra.mxu0 0
    %121 = vmatprep.subr.bf16.mxu0 0
    %122 = vmatpush1.bf16.msra.mxu0 0
    %123 = vmatprep.subr.bf16.mxu0 0
    %124 = vmatpush1.bf16.msra.mxu0 0
    %125 = vmatprep.subr.bf16.mxu0 0
    %126 = vmatpush1.bf16.msra.mxu0 0
    %127 = vmatprep.subr.bf16.mxu0 0
    %128 = vmatpush1.bf16.msra.mxu0 0
    %129 = vmatprep.subr.bf16.mxu0 0
    %130 = vmatpush1.bf16.msra.mxu0 0
    %131 = vmatprep.subr.bf16.mxu0 0
    %132 = vmatpush1.bf16.msra.mxu0 %v115
    %133 = vmatprep.subr.bf16.mxu0 0
    %134 = vmatpush2.bf16.msra.mxu0 0
    %135 = vmatprep.subr.bf16.mxu0 0
    %136 = vmatpush2.bf16.msra.mxu0 0
    %137 = vmatprep.subr.bf16.mxu0 0
    %138 = vmatpush2.bf16.msra.mxu0 0
    %139 = vmatprep.subr.bf16.mxu0 0
    %140 = vmatpush2.bf16.msra.mxu0 0
    %141 = vmatprep.subr.bf16.mxu0 0
    %142 = vmatpush2.bf16.msra.mxu0 0
    %143 = vmatprep.subr.bf16.mxu0 0
    %144 = vmatpush2.bf16.msra.mxu0 0
    %145 = vmatprep.subr.bf16.mxu0 0
    %146 = vmatpush2.bf16.msra.mxu0 0
    %147 = vmatprep.subr.bf16.mxu0 0
    %148 = vmatpush2.bf16.msra.mxu0 0
    %149 = vmatprep.mubr.bf16.mxu0 0
    %150 = vmatmul.mubr.bf16.gmra.mxu0 %v111
    %v151 = vpop.f32.mrf.mxu0
    %v152 = vadd.f32 %v99, %v151
    %v153 = vpop.f32.mrf.mxu0
    %v154 = vpop.f32.mrf.mxu0
    %v155 = vpop.f32.mrf.mxu0
    %156 = vdwg.mxu0
    %v157 = vld [vmem:[%s4] sm:$0x1]
    %v159 = vlaneseq
    %v160 = vshrl.u32 %v159, 7
    %v161 = vsub.s32 0, %v160
    %v162 = vrot.slane %v157, %v161
    %v164 = vadd.f32 %v152, %v162
    %v165 = vmax.f32 %v164, 0.0
    %v166 = vpack.c.bf16 %v165, %v165
    %v167 = vld [vmem:[#allocation3] sm:$0xf]
    %v168 = vld [vmem:[#allocation3 + $0x4] sm:$0xf]
    %v169 = vld [vmem:[#allocation3 + $0x8] sm:$0xf]
    %v170 = vld [vmem:[#allocation3 + $0xc] sm:$0xf]
    %v171 = vld [vmem:[#allocation3 + $0x10] sm:$0xf]
    %v172 = vld [vmem:[#allocation3 + $0x14] sm:$0xf]
    %v173 = vld [vmem:[#allocation3 + $0x18] sm:$0xf]
    %v174 = vld [vmem:[#allocation3 + $0x1c] sm:$0xf]
    %v175 = vld [vmem:[#allocation3 + $0x20] sm:$0xf]
    %v176 = vld [vmem:[#allocation3 + $0x24] sm:$0xf]
    %v177 = vld [vmem:[#allocation3 + $0x28] sm:$0xf]
    %v178 = vld [vmem:[#allocation3 + $0x2c] sm:$0xf]
    %v179 = vld [vmem:[#allocation3 + $0x30] sm:$0xf]
    %v180 = vld [vmem:[#allocation3 + $0x34] sm:$0xf]
    %v181 = vld [vmem:[#allocation3 + $0x38] sm:$0xf]
    %v182 = vld [vmem:[#allocation3 + $0x3c] sm:$0xf]
    %v183 = vld [vmem:[%s6] sm:$0x1]
    %v185 = vlaneseq
    %v186 = vshrl.u32 %v185, 7
    %v187 = vsub.s32 0, %v186
    %v188 = vrot.slane %v183, %v187
    %v206 = vunpack.c.l.b16 %v167
    %v207 = vunpack.c.l.b16 %v168
    %v208 = vunpack.c.l.b16 %v169
    %v209 = vunpack.c.l.b16 %v170
    %v210 = vunpack.c.l.b16 %v171
    %v211 = vunpack.c.l.b16 %v172
    %v212 = vunpack.c.l.b16 %v173
    %v213 = vunpack.c.l.b16 %v174
    %v214 = vunpack.c.l.b16 %v175
    %v215 = vunpack.c.l.b16 %v176
    %v216 = vunpack.c.l.b16 %v177
    %v217 = vunpack.c.l.b16 %v178
    %v218 = vunpack.c.l.b16 %v179
    %v219 = vunpack.c.l.b16 %v180
    %v220 = vunpack.c.l.b16 %v181
    %v221 = vunpack.c.l.b16 %v182
    %v222 = vpack.c.b16 %v207, %v206
    %v223 = vpack.c.b16 %v209, %v208
    %v224 = vpack.c.b16 %v211, %v210
    %v225 = vpack.c.b16 %v213, %v212
    %v226 = vpack.c.b16 %v215, %v214
    %v227 = vpack.c.b16 %v217, %v216
    %v228 = vpack.c.b16 %v219, %v218
    %v229 = vpack.c.b16 %v221, %v220
    %238 = vmatprep.subr.bf16.mxu0 0
    %239 = vmatpush1.bf16.msra.mxu0 %v229
    %240 = vmatprep.subr.bf16.mxu0 0
    %241 = vmatpush1.bf16.msra.mxu0 %v228
    %242 = vmatprep.subr.bf16.mxu0 0
    %243 = vmatpush1.bf16.msra.mxu0 %v227
    %244 = vmatprep.subr.bf16.mxu0 0
    %245 = vmatpush1.bf16.msra.mxu0 %v226
    %246 = vmatprep.subr.bf16.mxu0 0
    %247 = vmatpush1.bf16.msra.mxu0 %v225
    %248 = vmatprep.subr.bf16.mxu0 0
    %249 = vmatpush1.bf16.msra.mxu0 %v224
    %250 = vmatprep.subr.bf16.mxu0 0
    %251 = vmatpush1.bf16.msra.mxu0 %v223
    %252 = vmatprep.subr.bf16.mxu0 0
    %253 = vmatpush1.bf16.msra.mxu0 %v222
    %254 = vmatprep.subr.bf16.mxu0 0
    %255 = vmatpush2.bf16.msra.mxu0 0
    %256 = vmatprep.subr.bf16.mxu0 0
    %257 = vmatpush2.bf16.msra.mxu0 0
    %258 = vmatprep.subr.bf16.mxu0 0
    %259 = vmatpush2.bf16.msra.mxu0 0
    %260 = vmatprep.subr.bf16.mxu0 0
    %261 = vmatpush2.bf16.msra.mxu0 0
    %262 = vmatprep.subr.bf16.mxu0 0
    %263 = vmatpush2.bf16.msra.mxu0 0
    %264 = vmatprep.subr.bf16.mxu0 0
    %265 = vmatpush2.bf16.msra.mxu0 0
    %266 = vmatprep.subr.bf16.mxu0 0
    %267 = vmatpush2.bf16.msra.mxu0 0
    %268 = vmatprep.subr.bf16.mxu0 0
    %269 = vmatpush2.bf16.msra.mxu0 0
    %270 = vmatprep.mubr.bf16.mxu0 0
    %271 = vmatmul.mubr.bf16.gmra.mxu0 %v166
    %v272 = vpop.f32.mrf.mxu0
    %v273 = vadd.f32 %v188, %v272
    %v274 = vpop.f32.mrf.mxu0
    %v275 = vpop.f32.mrf.mxu0
    %v276 = vpop.f32.mrf.mxu0
    %277 = vdwg.mxu0
    %v278 = vmax.f32 %v273, 0.0
    %v279 = vld [vmem:[%s7] sm:$0x1]
    %v281 = vlaneseq
    %v282 = vshrl.u32 %v281, 7
    %v283 = vsub.s32 0, %v282
    %v284 = vrot.slane %v279, %v283
    %v286 = vmul.f32 %v278, %v284
    %287 = vadd.xlane.f32.xlu0 %v286
    %v288 = vpop.xlane.xlu0 %287
    %v289 = vld [vmem:[#allocation2] sm:$0x1]
    %v291 = vlaneseq
    %v292 = vshrl.u32 %v291, 7
    %v293 = vsub.s32 0, %v292
    %v294 = vrot.slane %v289, %v293
    %v296 = vadd.f32 %v288, %v294
    %vm297 = vcmask 7168
    %298 = vst.msk [vmem:[%s9] sm:$0xff] %vm297, %v296
    // Predicated region
    $region42: #{qnetwork_forward.1} parent=1 // pred_check
      _
    $region43: #{qnetwork_forward.1} parent=1 // pred_check_branch
      %300 = sbr.rel (0) target = $region45
    $region44: #{qnetwork_forward.1} parent=1 // pred_region
      _
    $region45: #{qnetwork_forward.1} parent=1 // pred_fallthru
      _
    // Predicated region
    $region46: #{qnetwork_forward.1} parent=1 // pred_check
      _
    $region47: #{qnetwork_forward.1} parent=1 // pred_check_branch
      %302 = sbr.rel (0) target = $region49
    $region48: #{qnetwork_forward.1} parent=1 // pred_region
      _
    $region49: #{qnetwork_forward.1} parent=1 // pred_fallthru
      _
    %303 = vsyncpa [#allocation4], 1

</llo_original>
